<compile_context>
chip_gen: v5e
topology: v5e:2x2
jax: 0.10.0
libtpu: 0.0.40
codegen_flags: <defaults>
</compile_context>

<pallas_src>
import functools

import jax
import jax.numpy as jnp
import numpy as np
from jax import lax
from jax.experimental import pallas as pl
from jax.experimental.pallas import tpu as pltpu


# ----------------------------- model hyper-params -----------------------------
IN_DIM = 4
OUT_DIM = 8
NUM = 5                     # grid_size
K = 3                       # spline_order
G_PTS = NUM + 2 * K + 1     # grid points after extend_grid = 12
N_COEF = NUM + K            # B-spline bases / coefficients per edge = 8

BATCH = 256                 # small demo batch: 2 lane-dense tiles of 128


# --------------------------------- kernel -------------------------------------
def kan_kernel(xt_ref, grid_ref, w_ref, o_ref, *, k, in_dim, n_coef):
    # xt_ref:   (in_dim, TB)                      -- batch on lanes
    # grid_ref: (in_dim, G_PTS)
    # w_ref:    (out_dim, in_dim*n_coef + in_dim) -- scales & mask pre-folded
    # o_ref:    (out_dim, TB)                     -- lane-dense store
    x = xt_ref[...].astype(jnp.float32)                    # (I, TB)
    g = grid_ref[...]                                      # (I, G)
    tb = x.shape[1]

    xg = x[:, None, :]                                     # (I, 1, TB)
    gl = g[:, :-1][:, :, None]                             # (I, G-1, 1)
    gr = g[:, 1:][:, :, None]

    # degree-0 bases: indicator of the half-open grid interval
    bas = jnp.logical_and(xg >= gl, xg < gr).astype(jnp.float32)   # (I, G-1, TB)

    # Cox-de Boor recursion.  Denominators depend only on the (tiny) grid, so compute
    # their reciprocals on (I, n) slices and multiply the wide (I, n, TB) tensors
    # (no TB-wide divides; reciprocal of a 1-vreg operand is essentially free).
    # NOTE: no nan_to_num needed -- the uniform extended grid is strictly increasing,
    # so every denominator is kk*h > 0 (matches the reference for this grid).
    for kk in range(1, k + 1):
        rl = (1.0 / (g[:, kk:-1] - g[:, : -(kk + 1)]))[:, :, None]   # (I, n, 1)
        rr = (1.0 / (g[:, kk + 1:] - g[:, 1:-kk]))[:, :, None]       # (I, n, 1)
        left = (xg - g[:, : -(kk + 1)][:, :, None]) * rl
        right = (g[:, kk + 1:][:, :, None] - xg) * rr
        bas = left * bas[:, :-1, :] + right * bas[:, 1:, :]
    # bas: (I, N_COEF, TB)

    base = x * jax.nn.sigmoid(x)                           # SiLU(x), (I, TB)

    # activation matrix: (I*C + I, TB); batch stays on lanes (layout-preserving reshape)
    act = jnp.concatenate([bas.reshape(in_dim * n_coef, tb), base], axis=0)

    # single MXU matmul: (O, I*C + I) @ (I*C + I, TB) -> (O, TB), lane-dense store.
    # HIGHEST precision keeps f32 accuracy (bf16 passes would miss the 2e-4 tolerance).
    o_ref[...] = jnp.dot(
        w_ref[...], act,
        preferred_element_type=jnp.float32,
        precision=lax.Precision.HIGHEST,
    ).astype(o_ref.dtype)


# --------------------------------- wrapper -------------------------------------
def _pick_tb(batch):
    # Lane-dense batch tile: multiple of 128, big enough to amortize the ~0.35us per
    # grid step, with >=2 grid steps when possible so megacore/pipelining has work.
    for cand in (1024, 512, 256, 128):
        if batch % cand == 0 and batch // cand >= 2:
            return cand
    for cand in (1024, 512, 256, 128):
        if batch % cand == 0:
            return cand
    return None  # ragged batch: wrapper pads to a multiple of 128


@functools.partial(jax.jit, static_argnames=("tb",))
def kan_layer_forward(x, grid, coef, scale_base, scale_sp, mask, *, tb=None):
    batch, in_dim = x.shape
    out_dim = coef.shape[1]
    n_coef = coef.shape[2]
    g_pts = grid.shape[1]

    if tb is None:
        tb = _pick_tb(batch)
    padded = batch
    if tb is None:
        tb = 128
        padded = ((batch + tb - 1) // tb) * tb
    assert padded % tb == 0

    # Fold scale_sp*mask into the spline coefficients and scale_base*mask into a base
    # weight: one (out_dim, in_dim*n_coef + in_dim) matmul weight total.
    w_sp = coef * (scale_sp * mask)[:, :, None]                          # (I, O, C)
    w_sp = jnp.transpose(w_sp, (1, 0, 2)).reshape(out_dim, in_dim * n_coef)
    w_base = jnp.transpose(scale_base * mask, (1, 0))                    # (O, I)
    w = jnp.concatenate([w_sp, w_base], axis=1).astype(jnp.float32)      # (O, I*C+I)

    xt = jnp.transpose(x.astype(jnp.float32), (1, 0))                    # (I, batch)
    if padded != batch:
        xt = jnp.pad(xt, ((0, 0), (0, padded - batch)))
    kdim = in_dim * n_coef + in_dim

    out_t = pl.pallas_call(
        functools.partial(kan_kernel, k=K, in_dim=in_dim, n_coef=n_coef),
        out_shape=jax.ShapeDtypeStruct((out_dim, padded), jnp.float32),
        grid=(padded // tb,),
        in_specs=[
            pl.BlockSpec((in_dim, tb), lambda b: (0, b)),
            pl.BlockSpec((in_dim, g_pts), lambda b: (0, 0)),
            pl.BlockSpec((out_dim, kdim), lambda b: (0, 0)),
        ],
        out_specs=pl.BlockSpec((out_dim, tb), lambda b: (0, b)),
        compiler_params=pltpu.CompilerParams(dimension_semantics=("parallel",)),
    )(xt, grid.astype(jnp.float32), w)
    return jnp.transpose(out_t[:, :batch], (1, 0))                       # (batch, O)


# ------------------------------ parameter setup --------------------------------
def make_params(key):
    # grid: linspace over grid_range expanded to (in_dim, num+1), then extend_grid(k)
    base_grid = jnp.linspace(-1.0, 1.0, NUM + 1)[None, :].repeat(IN_DIM, axis=0)
    h = (base_grid[:, -1:] - base_grid[:, :1]) / NUM
    grid = base_grid
    for _ in range(K):
        grid = jnp.concatenate([grid[:, :1] - h, grid, grid[:, -1:] + h], axis=1)
    # grid: (IN_DIM, NUM + 2K + 1), uniform and strictly increasing

    k_coef, k_sb, _ = jax.random.split(key, 3)
    # TODO(synk): curve2coef least-squares init of coef not reproduced; same-shape
    # deterministic small random init used instead (constructor-only difference).
    coef = (jax.random.uniform(k_coef, (IN_DIM, OUT_DIM, N_COEF)) - 0.5) * (0.1 / NUM)

    mask = jnp.ones((IN_DIM, OUT_DIM), jnp.float32)
    scale_base = (jax.random.uniform(k_sb, (IN_DIM, OUT_DIM)) * 2.0 - 1.0) / np.sqrt(IN_DIM)
    scale_sp = jnp.ones((IN_DIM, OUT_DIM), jnp.float32) * mask
    return (grid.astype(jnp.float32), coef.astype(jnp.float32),
            scale_base.astype(jnp.float32), scale_sp, mask)


# ---------------------------- numpy f64 reference -------------------------------
def reference_forward_np(x, grid, coef, scale_base, scale_sp, mask, k):
    x = np.asarray(x, np.float64)
    grid = np.asarray(grid, np.float64)
    coef = np.asarray(coef, np.float64)
    scale_base = np.asarray(scale_base, np.float64)
    scale_sp = np.asarray(scale_sp, np.float64)
    mask = np.asarray(mask, np.float64)

    xg = x[:, :, None]
    g = grid[None, :, :]
    bas = np.logical_and(xg >= g[:, :, :-1], xg < g[:, :, 1:]).astype(np.float64)
    for kk in range(1, k + 1):
        left = (xg - g[:, :, : -(kk + 1)]) / (g[:, :, kk:-1] - g[:, :, : -(kk + 1)])
        right = (g[:, :, kk + 1:] - xg) / (g[:, :, kk + 1:] - g[:, :, 1:-kk])
        bas = left * bas[:, :, :-1] + right * bas[:, :, 1:]
    bas = np.nan_to_num(bas)
    spline = np.einsum('bic,ioc->bio', bas, coef)
    base = x / (1.0 + np.exp(-x))                     # SiLU
    y = scale_base[None] * base[:, :, None] + scale_sp[None] * spline
    y = mask[None] * y
    return y.sum(axis=1)


if __name__ == "__main__":
    key = jax.random.PRNGKey(0)
    k_x, k_p = jax.random.split(key)
    # inputs in (-1, 1) so the splines stay within the active grid range
    x = jax.random.uniform(k_x, (BATCH, IN_DIM), jnp.float32, minval=-1.0, maxval=1.0)

    grid, coef, scale_base, scale_sp, mask = make_params(k_p)

    out = kan_layer_forward(x, grid, coef, scale_base, scale_sp, mask)
    out = jax.block_until_ready(out)

    ref = reference_forward_np(x, grid, coef, scale_base, scale_sp, mask, K)
    np.testing.assert_allclose(np.asarray(out), ref, rtol=2e-4, atol=2e-4)

    print("KERNEL_OK")
</pallas_src>

<mosaic_0001>
module attributes {stable_mosaic.version = 11 : i64} {
  func.func @kan_kernel(%arg0: i32, %arg1: memref<4x128xf32, #tpu.memory_space<vmem>>, %arg2: memref<4x12xf32, #tpu.memory_space<vmem>>, %arg3: memref<8x36xf32, #tpu.memory_space<vmem>>, %arg4: memref<8x128xf32, #tpu.memory_space<vmem>>) attributes {dimension_semantics = [#tpu.dimension_semantics<parallel>], iteration_bounds = array<i64: 2>, scalar_prefetch = 0 : i64, scratch_operands = 0 : i64, tpu.core_type = #tpu.core_type<tc>, window_params = [{transform_indices = @transform_0, window_bounds = array<i64: 4, 128>}, {pipeline_mode = #tpu.pipeline_mode<synchronous>, transform_indices = @transform_1, window_bounds = array<i64: 4, 12>}, {pipeline_mode = #tpu.pipeline_mode<synchronous>, transform_indices = @transform_2, window_bounds = array<i64: 8, 36>}, {transform_indices = @transform_3, window_bounds = array<i64: 8, 128>}]} {
    %c0 = arith.constant 0 : index
    %c0_0 = arith.constant 0 : index
    %0 = vector.load %arg1[%c0, %c0_0] : memref<4x128xf32, #tpu.memory_space<vmem>>, vector<4x128xf32>
    %c0_1 = arith.constant 0 : index
    %c0_2 = arith.constant 0 : index
    %1 = vector.load %arg2[%c0_1, %c0_2] : memref<4x12xf32, #tpu.memory_space<vmem>>, vector<4x12xf32>
    %2 = vector.shape_cast %0 : vector<4x128xf32> to vector<4x1x128xf32>
    %3 = vector.extract_strided_slice %1 {offsets = [0, 0], sizes = [4, 11], strides = [1, 1]} : vector<4x12xf32> to vector<4x11xf32>
    %4 = vector.shape_cast %3 : vector<4x11xf32> to vector<4x11x1xf32>
    %5 = vector.extract_strided_slice %1 {offsets = [0, 1], sizes = [4, 11], strides = [1, 1]} : vector<4x12xf32> to vector<4x11xf32>
    %6 = vector.shape_cast %5 : vector<4x11xf32> to vector<4x11x1xf32>
    %7 = vector.broadcast %2 : vector<4x1x128xf32> to vector<4x11x128xf32>
    %8 = vector.broadcast %4 : vector<4x11x1xf32> to vector<4x11x128xf32>
    %9 = arith.cmpf oge, %7, %8 : vector<4x11x128xf32>
    %10 = vector.broadcast %2 : vector<4x1x128xf32> to vector<4x11x128xf32>
    %11 = vector.broadcast %6 : vector<4x11x1xf32> to vector<4x11x128xf32>
    %12 = arith.cmpf olt, %10, %11 : vector<4x11x128xf32>
    %13 = arith.andi %9, %12 : vector<4x11x128xi1>
    %14 = arith.extui %13 : vector<4x11x128xi1> to vector<4x11x128xi32>
    %15 = arith.sitofp %14 : vector<4x11x128xi32> to vector<4x11x128xf32>
    %16 = vector.extract_strided_slice %1 {offsets = [0, 1], sizes = [4, 10], strides = [1, 1]} : vector<4x12xf32> to vector<4x10xf32>
    %17 = vector.extract_strided_slice %1 {offsets = [0, 0], sizes = [4, 10], strides = [1, 1]} : vector<4x12xf32> to vector<4x10xf32>
    %18 = arith.subf %16, %17 : vector<4x10xf32>
    %cst = arith.constant 1.000000e+00 : f32
    %19 = vector.broadcast %cst : f32 to vector<4x10xf32>
    %20 = arith.divf %19, %18 : vector<4x10xf32>
    %21 = vector.shape_cast %20 : vector<4x10xf32> to vector<4x10x1xf32>
    %22 = vector.extract_strided_slice %1 {offsets = [0, 2], sizes = [4, 10], strides = [1, 1]} : vector<4x12xf32> to vector<4x10xf32>
    %23 = vector.extract_strided_slice %1 {offsets = [0, 1], sizes = [4, 10], strides = [1, 1]} : vector<4x12xf32> to vector<4x10xf32>
    %24 = arith.subf %22, %23 : vector<4x10xf32>
    %cst_3 = arith.constant 1.000000e+00 : f32
    %25 = vector.broadcast %cst_3 : f32 to vector<4x10xf32>
    %26 = arith.divf %25, %24 : vector<4x10xf32>
    %27 = vector.shape_cast %26 : vector<4x10xf32> to vector<4x10x1xf32>
    %28 = vector.extract_strided_slice %1 {offsets = [0, 0], sizes = [4, 10], strides = [1, 1]} : vector<4x12xf32> to vector<4x10xf32>
    %29 = vector.shape_cast %28 : vector<4x10xf32> to vector<4x10x1xf32>
    %30 = vector.broadcast %2 : vector<4x1x128xf32> to vector<4x10x128xf32>
    %31 = vector.broadcast %29 : vector<4x10x1xf32> to vector<4x10x128xf32>
    %32 = arith.subf %30, %31 : vector<4x10x128xf32>
    %33 = vector.broadcast %21 : vector<4x10x1xf32> to vector<4x10x128xf32>
    %34 = arith.mulf %32, %33 : vector<4x10x128xf32>
    %35 = vector.extract_strided_slice %1 {offsets = [0, 2], sizes = [4, 10], strides = [1, 1]} : vector<4x12xf32> to vector<4x10xf32>
    %36 = vector.shape_cast %35 : vector<4x10xf32> to vector<4x10x1xf32>
    %37 = vector.broadcast %36 : vector<4x10x1xf32> to vector<4x10x128xf32>
    %38 = vector.broadcast %2 : vector<4x1x128xf32> to vector<4x10x128xf32>
    %39 = arith.subf %37, %38 : vector<4x10x128xf32>
    %40 = vector.broadcast %27 : vector<4x10x1xf32> to vector<4x10x128xf32>
    %41 = arith.mulf %39, %40 : vector<4x10x128xf32>
    %42 = vector.extract_strided_slice %15 {offsets = [0, 0, 0], sizes = [4, 10, 128], strides = [1, 1, 1]} : vector<4x11x128xf32> to vector<4x10x128xf32>
    %43 = arith.mulf %34, %42 : vector<4x10x128xf32>
    %44 = vector.extract_strided_slice %15 {offsets = [0, 1, 0], sizes = [4, 10, 128], strides = [1, 1, 1]} : vector<4x11x128xf32> to vector<4x10x128xf32>
    %45 = arith.mulf %41, %44 : vector<4x10x128xf32>
    %46 = arith.addf %43, %45 : vector<4x10x128xf32>
    %47 = vector.extract_strided_slice %1 {offsets = [0, 2], sizes = [4, 9], strides = [1, 1]} : vector<4x12xf32> to vector<4x9xf32>
    %48 = vector.extract_strided_slice %1 {offsets = [0, 0], sizes = [4, 9], strides = [1, 1]} : vector<4x12xf32> to vector<4x9xf32>
    %49 = arith.subf %47, %48 : vector<4x9xf32>
    %cst_4 = arith.constant 1.000000e+00 : f32
    %50 = vector.broadcast %cst_4 : f32 to vector<4x9xf32>
    %51 = arith.divf %50, %49 : vector<4x9xf32>
    %52 = vector.shape_cast %51 : vector<4x9xf32> to vector<4x9x1xf32>
    %53 = vector.extract_strided_slice %1 {offsets = [0, 3], sizes = [4, 9], strides = [1, 1]} : vector<4x12xf32> to vector<4x9xf32>
    %54 = vector.extract_strided_slice %1 {offsets = [0, 1], sizes = [4, 9], strides = [1, 1]} : vector<4x12xf32> to vector<4x9xf32>
    %55 = arith.subf %53, %54 : vector<4x9xf32>
    %cst_5 = arith.constant 1.000000e+00 : f32
    %56 = vector.broadcast %cst_5 : f32 to vector<4x9xf32>
    %57 = arith.divf %56, %55 : vector<4x9xf32>
    %58 = vector.shape_cast %57 : vector<4x9xf32> to vector<4x9x1xf32>
    %59 = vector.extract_strided_slice %1 {offsets = [0, 0], sizes = [4, 9], strides = [1, 1]} : vector<4x12xf32> to vector<4x9xf32>
    %60 = vector.shape_cast %59 : vector<4x9xf32> to vector<4x9x1xf32>
    %61 = vector.broadcast %2 : vector<4x1x128xf32> to vector<4x9x128xf32>
    %62 = vector.broadcast %60 : vector<4x9x1xf32> to vector<4x9x128xf32>
    %63 = arith.subf %61, %62 : vector<4x9x128xf32>
    %64 = vector.broadcast %52 : vector<4x9x1xf32> to vector<4x9x128xf32>
    %65 = arith.mulf %63, %64 : vector<4x9x128xf32>
    %66 = vector.extract_strided_slice %1 {offsets = [0, 3], sizes = [4, 9], strides = [1, 1]} : vector<4x12xf32> to vector<4x9xf32>
    %67 = vector.shape_cast %66 : vector<4x9xf32> to vector<4x9x1xf32>
    %68 = vector.broadcast %67 : vector<4x9x1xf32> to vector<4x9x128xf32>
    %69 = vector.broadcast %2 : vector<4x1x128xf32> to vector<4x9x128xf32>
    %70 = arith.subf %68, %69 : vector<4x9x128xf32>
    %71 = vector.broadcast %58 : vector<4x9x1xf32> to vector<4x9x128xf32>
    %72 = arith.mulf %70, %71 : vector<4x9x128xf32>
    %73 = vector.extract_strided_slice %46 {offsets = [0, 0, 0], sizes = [4, 9, 128], strides = [1, 1, 1]} : vector<4x10x128xf32> to vector<4x9x128xf32>
    %74 = arith.mulf %65, %73 : vector<4x9x128xf32>
    %75 = vector.extract_strided_slice %46 {offsets = [0, 1, 0], sizes = [4, 9, 128], strides = [1, 1, 1]} : vector<4x10x128xf32> to vector<4x9x128xf32>
    %76 = arith.mulf %72, %75 : vector<4x9x128xf32>
    %77 = arith.addf %74, %76 : vector<4x9x128xf32>
    %78 = vector.extract_strided_slice %1 {offsets = [0, 3], sizes = [4, 8], strides = [1, 1]} : vector<4x12xf32> to vector<4x8xf32>
    %79 = vector.extract_strided_slice %1 {offsets = [0, 0], sizes = [4, 8], strides = [1, 1]} : vector<4x12xf32> to vector<4x8xf32>
    %80 = arith.subf %78, %79 : vector<4x8xf32>
    %cst_6 = arith.constant 1.000000e+00 : f32
    %81 = vector.broadcast %cst_6 : f32 to vector<4x8xf32>
    %82 = arith.divf %81, %80 : vector<4x8xf32>
    %83 = vector.shape_cast %82 : vector<4x8xf32> to vector<4x8x1xf32>
    %84 = vector.extract_strided_slice %1 {offsets = [0, 4], sizes = [4, 8], strides = [1, 1]} : vector<4x12xf32> to vector<4x8xf32>
    %85 = vector.extract_strided_slice %1 {offsets = [0, 1], sizes = [4, 8], strides = [1, 1]} : vector<4x12xf32> to vector<4x8xf32>
    %86 = arith.subf %84, %85 : vector<4x8xf32>
    %cst_7 = arith.constant 1.000000e+00 : f32
    %87 = vector.broadcast %cst_7 : f32 to vector<4x8xf32>
    %88 = arith.divf %87, %86 : vector<4x8xf32>
    %89 = vector.shape_cast %88 : vector<4x8xf32> to vector<4x8x1xf32>
    %90 = vector.extract_strided_slice %1 {offsets = [0, 0], sizes = [4, 8], strides = [1, 1]} : vector<4x12xf32> to vector<4x8xf32>
    %91 = vector.shape_cast %90 : vector<4x8xf32> to vector<4x8x1xf32>
    %92 = vector.broadcast %2 : vector<4x1x128xf32> to vector<4x8x128xf32>
    %93 = vector.broadcast %91 : vector<4x8x1xf32> to vector<4x8x128xf32>
    %94 = arith.subf %92, %93 : vector<4x8x128xf32>
    %95 = vector.broadcast %83 : vector<4x8x1xf32> to vector<4x8x128xf32>
    %96 = arith.mulf %94, %95 : vector<4x8x128xf32>
    %97 = vector.extract_strided_slice %1 {offsets = [0, 4], sizes = [4, 8], strides = [1, 1]} : vector<4x12xf32> to vector<4x8xf32>
    %98 = vector.shape_cast %97 : vector<4x8xf32> to vector<4x8x1xf32>
    %99 = vector.broadcast %98 : vector<4x8x1xf32> to vector<4x8x128xf32>
    %100 = vector.broadcast %2 : vector<4x1x128xf32> to vector<4x8x128xf32>
    %101 = arith.subf %99, %100 : vector<4x8x128xf32>
    %102 = vector.broadcast %89 : vector<4x8x1xf32> to vector<4x8x128xf32>
    %103 = arith.mulf %101, %102 : vector<4x8x128xf32>
    %104 = vector.extract_strided_slice %77 {offsets = [0, 0, 0], sizes = [4, 8, 128], strides = [1, 1, 1]} : vector<4x9x128xf32> to vector<4x8x128xf32>
    %105 = arith.mulf %96, %104 : vector<4x8x128xf32>
    %106 = vector.extract_strided_slice %77 {offsets = [0, 1, 0], sizes = [4, 8, 128], strides = [1, 1, 1]} : vector<4x9x128xf32> to vector<4x8x128xf32>
    %107 = arith.mulf %103, %106 : vector<4x8x128xf32>
    %108 = arith.addf %105, %107 : vector<4x8x128xf32>
    %109 = arith.negf %0 : vector<4x128xf32>
    %110 = math.exp %109 : vector<4x128xf32>
    %cst_8 = arith.constant 1.000000e+00 : f32
    %111 = vector.broadcast %cst_8 : f32 to vector<4x128xf32>
    %112 = arith.addf %111, %110 : vector<4x128xf32>
    %113 = arith.divf %111, %112 : vector<4x128xf32>
    %114 = arith.mulf %0, %113 : vector<4x128xf32>
    %115 = vector.shape_cast %108 : vector<4x8x128xf32> to vector<32x128xf32>
    %116 = tpu.concatenate %115, %114 in 0 : vector<32x128xf32>, vector<4x128xf32> -> vector<36x128xf32>
    %c0_9 = arith.constant 0 : index
    %c0_10 = arith.constant 0 : index
    %117 = vector.load %arg3[%c0_9, %c0_10] : memref<8x36xf32, #tpu.memory_space<vmem>>, vector<8x36xf32>
    %cst_11 = arith.constant dense<0.000000e+00> : vector<8x128xf32>
    %118 = tpu.matmul %117, %116, %cst_11 {dimension_numbers = #tpu.dot_dimension_numbers<[1], [0], [0], [1], [0, 0, 1, 1], [], []>, precision = #tpu.contract_precision<fp32>} : vector<8x36xf32>, vector<36x128xf32>, vector<8x128xf32> -> vector<8x128xf32>
    %c0_12 = arith.constant 0 : index
    %c0_13 = arith.constant 0 : index
    %119 = vector.load %arg4[%c0_12, %c0_13] : memref<8x128xf32, #tpu.memory_space<vmem>>, vector<8x128xf32>
    tpu.vector_store %arg4[%c0_12, %c0_13], %118 {strides = array<i32>} : memref<8x128xf32, #tpu.memory_space<vmem>>, vector<8x128xf32>,
    return
  }
  func.func @transform_0(%arg0: i32) -> (i32, i32) {
    %c0_i32 = arith.constant 0 : i32
    %c0_i32_0 = arith.constant 0 : i32
    return %c0_i32, %arg0 : i32, i32
  }
  func.func @transform_1(%arg0: i32) -> (i32, i32) {
    %c0_i32 = arith.constant 0 : i32
    %c0_i32_0 = arith.constant 0 : i32
    %c0_i32_1 = arith.constant 0 : i32
    return %c0_i32, %c0_i32_0 : i32, i32
  }
  func.func @transform_2(%arg0: i32) -> (i32, i32) {
    %c0_i32 = arith.constant 0 : i32
    %c0_i32_0 = arith.constant 0 : i32
    %c0_i32_1 = arith.constant 0 : i32
    return %c0_i32, %c0_i32_0 : i32, i32
  }
  func.func @transform_3(%arg0: i32) -> (i32, i32) {
    %c0_i32 = arith.constant 0 : i32
    %c0_i32_0 = arith.constant 0 : i32
    return %c0_i32, %arg0 : i32, i32
  }
}

</mosaic_0001>

<llo_original>
// kernel: mul.6
$region0: #{mul.6}
  #allocation2 [shape = 's32[1]{0}', space=sflag, size = 0x4, scoped, tag = 'scoped memory for mul.6']
  %s0 = inlined_call_operand.hbm [shape: f32[4,8], index: 0, kind: input, shape index: {}]
  %s1 = inlined_call_operand.vmem [shape: f32[4,8], index: 1, kind: input, shape index: {}]
  %s2 = inlined_call_operand.vmem [shape: f32[4,8], index: 2, kind: output, shape index: {}]
  $region1: #{mul.6} parent=0
    #allocation0 [shape = 'u8[2048]{0}', space=vmem, size = 0x800, scoped, tag = 'operand span for operand 0']
    #allocation1 [shape = 's32[1]{0}', space=sflag, size = 0x4, scoped, tag = 'scoped memory for mul.6']
    %3 = vsyncpa [#allocation1], 0
    %5 = vsyncadd [#allocation1], 0
    %s7 = sshll.u32 %s0, 4
    %s8 = int_to_ptr.hbm [resolvable:$true] %s7
    %s9 = sshll.u32 [#allocation0], 4
    %s10 = int_to_ptr.vmem [resolvable:$true] %s9
    %12 = dma.hbm_to_vmem [thread:$0]  %s8, 64, %s10, [#allocation1]
    %14 = dma.done [#allocation1], 64
    %v15 = vld [vmem:[#allocation0] sm:$0xf]
    %v16 = vld [vmem:[%s1] sm:$0xf]
    %17 = xla_tuple %v15, %v16
    %18 = xla_tuple %17
    %v19 = vmul.f32 %v15, %v16
    %20 = xla_tuple %v19
    %21 = vst [vmem:[%s2] sm:$0xf] %v19
    %22 = vsyncpa [#allocation1], 1

// kernel: kan_layer_forward.1
$region0: #{kan_layer_forward.1}
  #allocation0 [shape = 'u32[]', space=smem, size = 0x4, offset = 0x4, fixed_abs, tag = 'smem constant byte address 0x4 - core index']
  #allocation1 [shape = 'u32[72,128]{1,0:T(1,128)}', space=vmem, size = 0x9000, scoped, tag = 'internal scratch']
  %s0 = inlined_call_operand.vmem [shape: f32[4,256], index: 0, kind: input, shape index: {}]
  %s1 = inlined_call_operand.vmem [shape: f32[4,12], index: 1, kind: input, shape index: {}]
  %s2 = inlined_call_operand.vmem [shape: f32[8,36], index: 2, kind: input, shape index: {}]
  %s3 = inlined_call_operand.hbm [shape: f32[8,256], index: 3, kind: output, shape index: {}]
  %s4 = sld [smem:[#allocation0]]
  $region45: #{kan_layer_forward.1} parent=0
    _
  %s6 = ssub.s32 1, %s4
  %s7 = scalar_select 0, %s6, %s4
  $region1: #{kan_layer_forward.1} parent=0
    #allocation2 [shape = 'u8[8192]{0}', space=vmem, size = 0x2000, scoped, tag = 'output window, operand 0']
    #allocation3 [shape = 's32[2]{0}', space=sflag, size = 0x8, scoped, tag = 'scoped memory for kan_layer_forward.1']
    %8 = vsyncpa [#allocation3], 0
    %s9 = scalar_lea.sflag [#allocation3], 1
    %10 = vsyncpa %s9, 0
    loop: start=0, step=1, limit=4
    $region2: #{kan_layer_forward.1} parent=1 // loop_pre_header
      _
    $region3: #{kan_layer_forward.1} parent=1 // loop_header
      %s12 = sphi 0, %s16
      %p13 = scmp.ge.s32.totalorder %s12, 4
      %s22 = sphi 0, %s24
      %s25 = sphi 0, %s22
      %s26 = sphi 0, %s25
      %s42 = sphi 0, %s26
      %s46 = sphi 0, %s46
      %s48 = sphi 0, %s46
      %s49 = sphi 0, %s48
      %s63 = sphi 0, %s49
      %s67 = sphi 0, %s67
      %s69 = sphi 0, %s67
      %s70 = sphi 0, %s69
      %s84 = sphi 0, %s70
      %s90 = sphi 0, %s92
      %s93 = sphi 0, %s90
      %s94 = sphi 0, %s93
      %s110 = sphi 0, %s94
    $region4: #{kan_layer_forward.1} parent=1 // loop_header_branch
      %15 = sbr.rel (%p13) target = $region8
    $region5: #{kan_layer_forward.1} parent=1 // loop_body
      %s17 = ssub.s32 %s12, 1
      %s18 = ssub.s32 %s12, 2
      %s19 = sadd.s32 %s12, 1
      %s20 = ssub.s32 %s12, %s19
      %p21 = scmp.eq.s32.totalorder %s20, 0
      %s23 = sadd.s32 %s22, 1
      %s24 = scalar_select %p21, %s22, %s23
      %p27 = pneg %p21
      %p28 = scmp.eq.s32.totalorder %s12, 1
      %p29 = por %p27, %p28
      %p30 = scmp.ne.s32.totalorder %s22, %s25
      %p31 = scmp.eq.s32.totalorder %s12, 0
      %p32 = por %p30, %p31
      %p33 = scmp.ne.s32.totalorder %s22, %s25
      %p34 = scmp.eq.s32.totalorder %s17, 1
      %p35 = por %p33, %p34
      %p36 = scmp.ne.s32.totalorder %s25, %s26
      %p37 = scmp.eq.s32.totalorder %s17, 0
      %p38 = por %p36, %p37
      %p39 = scmp.ne.s32.totalorder %s25, %s26
      %p40 = scmp.eq.s32.totalorder %s18, 1
      %p41 = por %p39, %p40
      %p43 = scmp.ne.s32.totalorder %s26, %s42
      %p44 = scmp.eq.s32.totalorder %s18, 0
      %p45 = por %p43, %p44
      %s47 = sadd.s32 %s46, 1
      %p50 = scmp.eq.s32.totalorder %s12, 1
      %p51 = scmp.ne.s32.totalorder %s46, %s48
      %p52 = scmp.eq.s32.totalorder %s12, 0
      %p53 = por %p51, %p52
      %p54 = scmp.ne.s32.totalorder %s46, %s48
      %p55 = scmp.eq.s32.totalorder %s17, 1
      %p56 = por %p54, %p55
      %p57 = scmp.ne.s32.totalorder %s48, %s49
      %p58 = scmp.eq.s32.totalorder %s17, 0
      %p59 = por %p57, %p58
      %p60 = scmp.ne.s32.totalorder %s48, %s49
      %p61 = scmp.eq.s32.totalorder %s18, 1
      %p62 = por %p60, %p61
      %p64 = scmp.ne.s32.totalorder %s49, %s63
      %p65 = scmp.eq.s32.totalorder %s18, 0
      %p66 = por %p64, %p65
      %s68 = sadd.s32 %s67, 1
      %p71 = scmp.eq.s32.totalorder %s12, 1
      %p72 = scmp.ne.s32.totalorder %s67, %s69
      %p73 = scmp.eq.s32.totalorder %s12, 0
      %p74 = por %p72, %p73
      %p75 = scmp.ne.s32.totalorder %s67, %s69
      %p76 = scmp.eq.s32.totalorder %s17, 1
      %p77 = por %p75, %p76
      %p78 = scmp.ne.s32.totalorder %s69, %s70
      %p79 = scmp.eq.s32.totalorder %s17, 0
      %p80 = por %p78, %p79
      %p81 = scmp.ne.s32.totalorder %s69, %s70
      %p82 = scmp.eq.s32.totalorder %s18, 1
      %p83 = por %p81, %p82
      %p85 = scmp.ne.s32.totalorder %s70, %s84
      %p86 = scmp.eq.s32.totalorder %s18, 0
      %p87 = por %p85, %p86
      %s88 = ssub.s32 %s12, %s19
      %p89 = scmp.eq.s32.totalorder %s88, 0
      %s91 = sadd.s32 %s90, 1
      %s92 = scalar_select %p89, %s90, %s91
      %p95 = pneg %p89
      %p96 = scmp.eq.s32.totalorder %s12, 1
      %p97 = por %p95, %p96
      %p98 = scmp.ne.s32.totalorder %s90, %s93
      %p99 = scmp.eq.s32.totalorder %s12, 0
      %p100 = por %p98, %p99
      %p101 = scmp.ne.s32.totalorder %s90, %s93
      %p102 = scmp.eq.s32.totalorder %s17, 1
      %p103 = por %p101, %p102
      %p104 = scmp.ne.s32.totalorder %s93, %s94
      %p105 = scmp.eq.s32.totalorder %s17, 0
      %p106 = por %p104, %p105
      %p107 = scmp.ne.s32.totalorder %s93, %s94
      %p108 = scmp.eq.s32.totalorder %s18, 1
      %p109 = por %p107, %p108
      %p111 = scmp.ne.s32.totalorder %s94, %s110
      %p112 = scmp.eq.s32.totalorder %s18, 0
      %p113 = por %p111, %p112
      %p114 = scmp.le.s32.totalorder 1, %s12
      %p115 = scmp.lt.s32.totalorder %s12, 3
      %p116 = pnand %p114, %p115
      %p117 = pneg %p116
      // Predicated region
      $region9: #{kan_layer_forward.1} parent=5 // pred_check
        _
      $region10: #{kan_layer_forward.1} parent=5 // pred_check_branch
        %119 = sbr.rel (%p116) target = $region12
      $region11: #{kan_layer_forward.1} parent=5 // pred_region
        %s120 = ssub.s32 %s12, 1
        // Predicated region
        $region13: #{kan_layer_forward.1} parent=11 // pred_check
          %p121 = pneg %p59
        $region14: #{kan_layer_forward.1} parent=11 // pred_check_branch
          %123 = sbr.rel (%p121) target = $region16
        $region15: #{kan_layer_forward.1} parent=11 // pred_region
          _
        $region16: #{kan_layer_forward.1} parent=11 // pred_fallthru
          _
        // Predicated region
        $region17: #{kan_layer_forward.1} parent=11 // pred_check
          %p124 = pneg %p80
        $region18: #{kan_layer_forward.1} parent=11 // pred_check_branch
          %126 = sbr.rel (%p124) target = $region20
        $region19: #{kan_layer_forward.1} parent=11 // pred_region
          _
        $region20: #{kan_layer_forward.1} parent=11 // pred_fallthru
          _
      $region12: #{kan_layer_forward.1} parent=5 // pred_fallthru
        _
      %p127 = scmp.lt.s32.totalorder %s12, 2
      // Predicated region
      $region21: #{kan_layer_forward.1} parent=5 // pred_check
        %p128 = pneg %p127
      $region22: #{kan_layer_forward.1} parent=5 // pred_check_branch
        %130 = sbr.rel (%p128) target = $region24
      $region23: #{kan_layer_forward.1} parent=5 // pred_region
        // Predicated region
        $region25: #{kan_layer_forward.1} parent=23 // pred_check
          %p131 = pneg %p32
        $region26: #{kan_layer_forward.1} parent=23 // pred_check_branch
          %133 = sbr.rel (%p131) target = $region28
        $region27: #{kan_layer_forward.1} parent=23 // pred_region
          %p134 = scmp.lt.s32.totalorder %s12, 1
          %s135 = scalar_select %p134, %s12, 1
          %s136 = smul.addr %s135, 4
          %s137 = scalar_lea.vmem %s0, %s136
        $region28: #{kan_layer_forward.1} parent=23 // pred_fallthru
          _
      $region24: #{kan_layer_forward.1} parent=5 // pred_fallthru
        _
      %p138 = scmp.le.s32.totalorder 1, %s12
      %p139 = scmp.lt.s32.totalorder %s12, 3
      %p140 = pnand %p138, %p139
      %p141 = pneg %p140
      // Predicated region
      $region29: #{kan_layer_forward.1} parent=5 // pred_check
        _
      $region30: #{kan_layer_forward.1} parent=5 // pred_check_branch
        %143 = sbr.rel (%p140) target = $region32
      $region31: #{kan_layer_forward.1} parent=5 // pred_region
        %s144 = ssub.s32 %s12, 1
        %p145 = scmp.lt.s32.totalorder %s17, 1
        %s146 = scalar_select %p145, %s17, 1
        %s147 = smul.addr %s146, 4
        %s148 = scalar_lea.vmem %s0, %s147
        %p149 = pneg %p38
        %p150 = pneg %p35
        %p151 = pneg %p59
        %p152 = pneg %p56
        %p153 = pneg %p80
        %p154 = pneg %p77
        %p155 = pneg %p106
        %p156 = pneg %p103
        %s157 = sand.u32 %s93, 1
        %s158 = scalar_lea.sflag [#allocation3], %s157
        %s159 = sand.u32 %s93, 1
        %s160 = smul.addr %s159, 8
        %s161 = scalar_lea.vmem [#allocation2], %s160
        %p162 = scmp.lt.s32.totalorder %s17, 1
        %s163 = scalar_select %p162, %s17, 1
        %s164 = smul.addr %s163, 4
        %s165 = scalar_lea.vmem %s0, %s164
        %v166 = vld [vmem:[%s165] sm:$0xf]
        %v167 = vld [vmem:[%s1] sm:$0xf]
        %v169 = vrot.slane %v166, 1
        %v170 = vrot.slane %v166, 2
        %v171 = vrot.slane %v166, 3
        %v172 = vperm.slane %v167, 0
        %v173 = vlaneseq
        %v174 = vshrl.u32 %v173, 7
        %176 = vset.pattern.permute.xlu0 %v174
        %177 = vperm.xlu0 %176, %v172
        %v178 = vpop.permute.xlu0 %177
        %v179 = vlaneseq
        %v180 = vshrl.u32 %v179, 7
        %v181 = vadd.s32 %v180, 8
        %182 = vset.pattern.permute.xlu0 %v181
        %183 = vperm.xlu0 %182, %v172
        %v184 = vpop.permute.xlu0 %183
        %v185 = vperm.slane %v167, 1
        %v186 = vlaneseq
        %v187 = vshrl.u32 %v186, 7
        %189 = vset.pattern.permute.xlu0 %v187
        %190 = vperm.xlu0 %189, %v185
        %v191 = vpop.permute.xlu0 %190
        %v192 = vlaneseq
        %v193 = vshrl.u32 %v192, 7
        %v194 = vadd.s32 %v193, 8
        %195 = vset.pattern.permute.xlu0 %v194
        %196 = vperm.xlu0 %195, %v185
        %v197 = vpop.permute.xlu0 %196
        %v198 = vperm.slane %v167, 2
        %v199 = vlaneseq
        %v200 = vshrl.u32 %v199, 7
        %202 = vset.pattern.permute.xlu0 %v200
        %203 = vperm.xlu0 %202, %v198
        %v204 = vpop.permute.xlu0 %203
        %v205 = vlaneseq
        %v206 = vshrl.u32 %v205, 7
        %v207 = vadd.s32 %v206, 8
        %208 = vset.pattern.permute.xlu0 %v207
        %209 = vperm.xlu0 %208, %v198
        %v210 = vpop.permute.xlu0 %209
        %v211 = vperm.slane %v167, 3
        %v212 = vlaneseq
        %v213 = vshrl.u32 %v212, 7
        %215 = vset.pattern.permute.xlu0 %v213
        %216 = vperm.xlu0 %215, %v211
        %v217 = vpop.permute.xlu0 %216
        %v218 = vlaneseq
        %v219 = vshrl.u32 %v218, 7
        %v220 = vadd.s32 %v219, 8
        %221 = vset.pattern.permute.xlu0 %v220
        %222 = vperm.xlu0 %221, %v211
        %v223 = vpop.permute.xlu0 %222
        %v224 = vlaneseq
        %v225 = vshrl.u32 %v224, 7
        %v226 = vadd.s32 %v225, 1
        %227 = vset.pattern.permute.xlu0 %v226
        %228 = vperm.xlu0 %227, %v172
        %v229 = vpop.permute.xlu0 %228
        %v230 = vlaneseq
        %v231 = vshrl.u32 %v230, 7
        %v232 = vadd.s32 %v231, 9
        %233 = vset.pattern.permute.xlu0 %v232
        %234 = vperm.xlu0 %233, %v172
        %v235 = vpop.permute.xlu0 %234
        %v236 = vlaneseq
        %v237 = vshrl.u32 %v236, 7
        %v238 = vadd.s32 %v237, 1
        %239 = vset.pattern.permute.xlu0 %v238
        %240 = vperm.xlu0 %239, %v185
        %v241 = vpop.permute.xlu0 %240
        %v242 = vlaneseq
        %v243 = vshrl.u32 %v242, 7
        %v244 = vadd.s32 %v243, 9
        %245 = vset.pattern.permute.xlu0 %v244
        %246 = vperm.xlu0 %245, %v185
        %v247 = vpop.permute.xlu0 %246
        %v248 = vlaneseq
        %v249 = vshrl.u32 %v248, 7
        %v250 = vadd.s32 %v249, 1
        %251 = vset.pattern.permute.xlu0 %v250
        %252 = vperm.xlu0 %251, %v198
        %v253 = vpop.permute.xlu0 %252
        %v254 = vlaneseq
        %v255 = vshrl.u32 %v254, 7
        %v256 = vadd.s32 %v255, 9
        %257 = vset.pattern.permute.xlu0 %v256
        %258 = vperm.xlu0 %257, %v198
        %v259 = vpop.permute.xlu0 %258
        %v260 = vlaneseq
        %v261 = vshrl.u32 %v260, 7
        %v262 = vadd.s32 %v261, 1
        %263 = vset.pattern.permute.xlu0 %v262
        %264 = vperm.xlu0 %263, %v211
        %v265 = vpop.permute.xlu0 %264
        %v266 = vlaneseq
        %v267 = vshrl.u32 %v266, 7
        %v268 = vadd.s32 %v267, 9
        %269 = vset.pattern.permute.xlu0 %v268
        %270 = vperm.xlu0 %269, %v211
        %v271 = vpop.permute.xlu0 %270
        %v272 = vperm.slane %v166, 0
        %v273 = vperm.slane %v169, 0
        %v274 = vperm.slane %v170, 0
        %v275 = vperm.slane %v171, 0
        %vm280 = vcmp.ge.f32.partialorder %v272, %v178
        %vm281 = vcmp.ge.f32.partialorder %v272, %v184
        %vm282 = vcmp.ge.f32.partialorder %v273, %v191
        %vm283 = vcmp.ge.f32.partialorder %v273, %v197
        %vm284 = vcmp.ge.f32.partialorder %v274, %v204
        %vm285 = vcmp.ge.f32.partialorder %v274, %v210
        %vm286 = vcmp.ge.f32.partialorder %v275, %v217
        %vm287 = vcmp.ge.f32.partialorder %v275, %v223
        %vm288 = vcmp.lt.f32.partialorder %v272, %v229
        %vm289 = vcmp.lt.f32.partialorder %v272, %v235
        %vm290 = vcmp.lt.f32.partialorder %v273, %v241
        %vm291 = vcmp.lt.f32.partialorder %v273, %v247
        %vm292 = vcmp.lt.f32.partialorder %v274, %v253
        %vm293 = vcmp.lt.f32.partialorder %v274, %v259
        %vm294 = vcmp.lt.f32.partialorder %v275, %v265
        %vm295 = vcmp.lt.f32.partialorder %v275, %v271
        %vm296 = vmand %vm280, %vm288
        %vm297 = vmand %vm281, %vm289
        %vm298 = vmand %vm282, %vm290
        %vm299 = vmand %vm283, %vm291
        %vm300 = vmand %vm284, %vm292
        %vm301 = vmand %vm285, %vm293
        %vm302 = vmand %vm286, %vm294
        %vm303 = vmand %vm287, %vm295
        %v304 = vsel %vm296, 1, 0
        %v305 = vsel %vm297, 1, 0
        %v306 = vsel %vm298, 1, 0
        %v307 = vsel %vm299, 1, 0
        %v308 = vsel %vm300, 1, 0
        %v309 = vsel %vm301, 1, 0
        %v310 = vsel %vm302, 1, 0
        %v311 = vsel %vm303, 1, 0
        %v312 = vcvt.s32.f32 %v304
        %v313 = vcvt.s32.f32 %v305
        %v314 = vcvt.s32.f32 %v306
        %v315 = vcvt.s32.f32 %v307
        %v316 = vcvt.s32.f32 %v308
        %v317 = vcvt.s32.f32 %v309
        %v318 = vcvt.s32.f32 %v310
        %v319 = vcvt.s32.f32 %v311
        %321 = vrot.lane.b32.xlu0 %v167, 1
        %v322 = vpop.permute.xlu0 %321
        %v324 = vsub.f32 %v167, %v322
        %v325 = vrcp.pop %v324
        %v326 = vmul.f32 %v324, %v325
        %v327 = vsub.f32 1.0, %v326
        %v328 = vmul.f32 %v325, %v327
        %v329 = vadd.f32 %v325, %v328
        %vm330 = vweird.f32 %v324
        %vm331 = vweird.f32 %v325
        %vm332 = vmor %vm330, %vm331
        %v333 = vsel %vm332, %v325, %v329
        %v334 = vand.u32 2147483647, %v324
        %vm335 = vcmp.eq.f32.partialorder %v334, 8.507059e+37
        %v336 = vand.u32 %v324, 2147483648
        %v337 = vor.u32 1.1754944e-38, %v336
        %v338 = vsel %vm335, %v337, %v333
        %v339 = vmul.f32 1.0, %v338
        %v340 = vperm.slane %v339, 0
        %v341 = vlaneseq
        %v342 = vshrl.u32 %v341, 7
        %v343 = vadd.s32 %v342, 1
        %344 = vset.pattern.permute.xlu0 %v343
        %345 = vperm.xlu0 %344, %v340
        %v346 = vpop.permute.xlu0 %345
        %v347 = vlaneseq
        %v348 = vshrl.u32 %v347, 7
        %v349 = vadd.s32 %v348, 9
        %350 = vset.pattern.permute.xlu0 %v349
        %351 = vperm.xlu0 %350, %v340
        %v352 = vpop.permute.xlu0 %351
        %v353 = vperm.slane %v339, 1
        %v354 = vlaneseq
        %v355 = vshrl.u32 %v354, 7
        %v356 = vadd.s32 %v355, 1
        %357 = vset.pattern.permute.xlu0 %v356
        %358 = vperm.xlu0 %357, %v353
        %v359 = vpop.permute.xlu0 %358
        %v360 = vlaneseq
        %v361 = vshrl.u32 %v360, 7
        %v362 = vadd.s32 %v361, 9
        %363 = vset.pattern.permute.xlu0 %v362
        %364 = vperm.xlu0 %363, %v353
        %v365 = vpop.permute.xlu0 %364
        %v366 = vperm.slane %v339, 2
        %v367 = vlaneseq
        %v368 = vshrl.u32 %v367, 7
        %v369 = vadd.s32 %v368, 1
        %370 = vset.pattern.permute.xlu0 %v369
        %371 = vperm.xlu0 %370, %v366
        %v372 = vpop.permute.xlu0 %371
        %v373 = vlaneseq
        %v374 = vshrl.u32 %v373, 7
        %v375 = vadd.s32 %v374, 9
        %376 = vset.pattern.permute.xlu0 %v375
        %377 = vperm.xlu0 %376, %v366
        %v378 = vpop.permute.xlu0 %377
        %v379 = vperm.slane %v339, 3
        %v380 = vlaneseq
        %v381 = vshrl.u32 %v380, 7
        %v382 = vadd.s32 %v381, 1
        %383 = vset.pattern.permute.xlu0 %v382
        %384 = vperm.xlu0 %383, %v379
        %v385 = vpop.permute.xlu0 %384
        %v386 = vlaneseq
        %v387 = vshrl.u32 %v386, 7
        %v388 = vadd.s32 %v387, 9
        %389 = vset.pattern.permute.xlu0 %v388
        %390 = vperm.xlu0 %389, %v379
        %v391 = vpop.permute.xlu0 %390
        %v392 = vlaneseq
        %v393 = vshrl.u32 %v392, 7
        %v394 = vadd.s32 %v393, 2
        %395 = vset.pattern.permute.xlu0 %v394
        %396 = vperm.xlu0 %395, %v340
        %v397 = vpop.permute.xlu0 %396
        %v398 = vlaneseq
        %v399 = vshrl.u32 %v398, 7
        %v400 = vadd.s32 %v399, 10
        %401 = vset.pattern.permute.xlu0 %v400
        %402 = vperm.xlu0 %401, %v340
        %v403 = vpop.permute.xlu0 %402
        %v404 = vlaneseq
        %v405 = vshrl.u32 %v404, 7
        %v406 = vadd.s32 %v405, 2
        %407 = vset.pattern.permute.xlu0 %v406
        %408 = vperm.xlu0 %407, %v353
        %v409 = vpop.permute.xlu0 %408
        %v410 = vlaneseq
        %v411 = vshrl.u32 %v410, 7
        %v412 = vadd.s32 %v411, 10
        %413 = vset.pattern.permute.xlu0 %v412
        %414 = vperm.xlu0 %413, %v353
        %v415 = vpop.permute.xlu0 %414
        %v416 = vlaneseq
        %v417 = vshrl.u32 %v416, 7
        %v418 = vadd.s32 %v417, 2
        %419 = vset.pattern.permute.xlu0 %v418
        %420 = vperm.xlu0 %419, %v366
        %v421 = vpop.permute.xlu0 %420
        %v422 = vlaneseq
        %v423 = vshrl.u32 %v422, 7
        %v424 = vadd.s32 %v423, 10
        %425 = vset.pattern.permute.xlu0 %v424
        %426 = vperm.xlu0 %425, %v366
        %v427 = vpop.permute.xlu0 %426
        %v428 = vlaneseq
        %v429 = vshrl.u32 %v428, 7
        %v430 = vadd.s32 %v429, 2
        %431 = vset.pattern.permute.xlu0 %v430
        %432 = vperm.xlu0 %431, %v379
        %v433 = vpop.permute.xlu0 %432
        %v434 = vlaneseq
        %v435 = vshrl.u32 %v434, 7
        %v436 = vadd.s32 %v435, 10
        %437 = vset.pattern.permute.xlu0 %v436
        %438 = vperm.xlu0 %437, %v379
        %v439 = vpop.permute.xlu0 %438
        %v440 = vsub.f32 %v272, %v178
        %v441 = vsub.f32 %v272, %v184
        %v442 = vsub.f32 %v273, %v191
        %v443 = vsub.f32 %v273, %v197
        %v444 = vsub.f32 %v274, %v204
        %v445 = vsub.f32 %v274, %v210
        %v446 = vsub.f32 %v275, %v217
        %v447 = vsub.f32 %v275, %v223
        %v448 = vmul.f32 %v440, %v346
        %v449 = vmul.f32 %v441, %v352
        %v450 = vmul.f32 %v442, %v359
        %v451 = vmul.f32 %v443, %v365
        %v452 = vmul.f32 %v444, %v372
        %v453 = vmul.f32 %v445, %v378
        %v454 = vmul.f32 %v446, %v385
        %v455 = vmul.f32 %v447, %v391
        %v456 = vlaneseq
        %v457 = vshrl.u32 %v456, 7
        %v458 = vadd.s32 %v457, 2
        %459 = vset.pattern.permute.xlu0 %v458
        %460 = vperm.xlu0 %459, %v172
        %v461 = vpop.permute.xlu0 %460
        %v462 = vlaneseq
        %v463 = vshrl.u32 %v462, 7
        %v464 = vadd.s32 %v463, 10
        %465 = vset.pattern.permute.xlu0 %v464
        %466 = vperm.xlu0 %465, %v172
        %v467 = vpop.permute.xlu0 %466
        %v468 = vlaneseq
        %v469 = vshrl.u32 %v468, 7
        %v470 = vadd.s32 %v469, 2
        %471 = vset.pattern.permute.xlu0 %v470
        %472 = vperm.xlu0 %471, %v185
        %v473 = vpop.permute.xlu0 %472
        %v474 = vlaneseq
        %v475 = vshrl.u32 %v474, 7
        %v476 = vadd.s32 %v475, 10
        %477 = vset.pattern.permute.xlu0 %v476
        %478 = vperm.xlu0 %477, %v185
        %v479 = vpop.permute.xlu0 %478
        %v480 = vlaneseq
        %v481 = vshrl.u32 %v480, 7
        %v482 = vadd.s32 %v481, 2
        %483 = vset.pattern.permute.xlu0 %v482
        %484 = vperm.xlu0 %483, %v198
        %v485 = vpop.permute.xlu0 %484
        %v486 = vlaneseq
        %v487 = vshrl.u32 %v486, 7
        %v488 = vadd.s32 %v487, 10
        %489 = vset.pattern.permute.xlu0 %v488
        %490 = vperm.xlu0 %489, %v198
        %v491 = vpop.permute.xlu0 %490
        %v492 = vlaneseq
        %v493 = vshrl.u32 %v492, 7
        %v494 = vadd.s32 %v493, 2
        %495 = vset.pattern.permute.xlu0 %v494
        %496 = vperm.xlu0 %495, %v211
        %v497 = vpop.permute.xlu0 %496
        %v498 = vlaneseq
        %v499 = vshrl.u32 %v498, 7
        %v500 = vadd.s32 %v499, 10
        %501 = vset.pattern.permute.xlu0 %v500
        %502 = vperm.xlu0 %501, %v211
        %v503 = vpop.permute.xlu0 %502
        %v504 = vsub.f32 %v461, %v272
        %v505 = vsub.f32 %v467, %v272
        %v506 = vsub.f32 %v473, %v273
        %v507 = vsub.f32 %v479, %v273
        %v508 = vsub.f32 %v485, %v274
        %v509 = vsub.f32 %v491, %v274
        %v510 = vsub.f32 %v497, %v275
        %v511 = vsub.f32 %v503, %v275
        %v512 = vmul.f32 %v504, %v397
        %v513 = vmul.f32 %v505, %v403
        %v514 = vmul.f32 %v506, %v409
        %v515 = vmul.f32 %v507, %v415
        %v516 = vmul.f32 %v508, %v421
        %v517 = vmul.f32 %v509, %v427
        %v518 = vmul.f32 %v510, %v433
        %v519 = vmul.f32 %v511, %v439
        %v520 = vmul.f32 %v448, %v312
        %v521 = vmul.f32 %v449, %v313
        %v522 = vmul.f32 %v450, %v314
        %v523 = vmul.f32 %v451, %v315
        %v524 = vmul.f32 %v452, %v316
        %v525 = vmul.f32 %v453, %v317
        %v526 = vmul.f32 %v454, %v318
        %v527 = vmul.f32 %v455, %v319
        %vm536 = vcmask 1046528
        %v537 = vrot.slane %v312, 1
        %v538 = vrot.slane %v313, 1
        %v539 = vsel %vm536, %v537, %v538
        %v540 = vrot.slane %v314, 1
        %v541 = vrot.slane %v315, 1
        %v542 = vsel %vm536, %v540, %v541
        %v543 = vrot.slane %v316, 1
        %v544 = vrot.slane %v317, 1
        %v545 = vsel %vm536, %v543, %v544
        %v546 = vrot.slane %v318, 1
        %v547 = vrot.slane %v319, 1
        %v548 = vsel %vm536, %v546, %v547
        %v557 = vmul.f32 %v512, %v539
        %v558 = vmul.f32 %v513, %v538
        %v559 = vmul.f32 %v514, %v542
        %v560 = vmul.f32 %v515, %v541
        %v561 = vmul.f32 %v516, %v545
        %v562 = vmul.f32 %v517, %v544
        %v563 = vmul.f32 %v518, %v548
        %v564 = vmul.f32 %v519, %v547
        %v565 = vadd.f32 %v520, %v557
        %v566 = vadd.f32 %v521, %v558
        %v567 = vadd.f32 %v522, %v559
        %v568 = vadd.f32 %v523, %v560
        %v569 = vadd.f32 %v524, %v561
        %v570 = vadd.f32 %v525, %v562
        %v571 = vadd.f32 %v526, %v563
        %v572 = vadd.f32 %v527, %v564
        %573 = vrot.lane.b32.xlu0 %v167, 2
        %v574 = vpop.permute.xlu0 %573
        %v576 = vsub.f32 %v167, %v574
        %v577 = vrcp.pop %v576
        %v578 = vmul.f32 %v576, %v577
        %v579 = vsub.f32 1.0, %v578
        %v580 = vmul.f32 %v577, %v579
        %v581 = vadd.f32 %v577, %v580
        %vm582 = vweird.f32 %v576
        %vm583 = vweird.f32 %v577
        %vm584 = vmor %vm582, %vm583
        %v585 = vsel %vm584, %v577, %v581
        %v586 = vand.u32 2147483647, %v576
        %vm587 = vcmp.eq.f32.partialorder %v586, 8.507059e+37
        %v588 = vand.u32 %v576, 2147483648
        %v589 = vor.u32 1.1754944e-38, %v588
        %v590 = vsel %vm587, %v589, %v585
        %v591 = vmul.f32 1.0, %v590
        %v592 = vperm.slane %v591, 0
        %v593 = vlaneseq
        %v594 = vshrl.u32 %v593, 7
        %v595 = vadd.s32 %v594, 2
        %596 = vset.pattern.permute.xlu0 %v595
        %597 = vperm.xlu0 %596, %v592
        %v598 = vpop.permute.xlu0 %597
        %v599 = vlaneseq
        %v600 = vshrl.u32 %v599, 7
        %v601 = vadd.s32 %v600, 10
        %602 = vset.pattern.permute.xlu0 %v601
        %603 = vperm.xlu0 %602, %v592
        %v604 = vpop.permute.xlu0 %603
        %v605 = vperm.slane %v591, 1
        %v606 = vlaneseq
        %v607 = vshrl.u32 %v606, 7
        %v608 = vadd.s32 %v607, 2
        %609 = vset.pattern.permute.xlu0 %v608
        %610 = vperm.xlu0 %609, %v605
        %v611 = vpop.permute.xlu0 %610
        %v612 = vlaneseq
        %v613 = vshrl.u32 %v612, 7
        %v614 = vadd.s32 %v613, 10
        %615 = vset.pattern.permute.xlu0 %v614
        %616 = vperm.xlu0 %615, %v605
        %v617 = vpop.permute.xlu0 %616
        %v618 = vperm.slane %v591, 2
        %v619 = vlaneseq
        %v620 = vshrl.u32 %v619, 7
        %v621 = vadd.s32 %v620, 2
        %622 = vset.pattern.permute.xlu0 %v621
        %623 = vperm.xlu0 %622, %v618
        %v624 = vpop.permute.xlu0 %623
        %v625 = vlaneseq
        %v626 = vshrl.u32 %v625, 7
        %v627 = vadd.s32 %v626, 10
        %628 = vset.pattern.permute.xlu0 %v627
        %629 = vperm.xlu0 %628, %v618
        %v630 = vpop.permute.xlu0 %629
        %v631 = vperm.slane %v591, 3
        %v632 = vlaneseq
        %v633 = vshrl.u32 %v632, 7
        %v634 = vadd.s32 %v633, 2
        %635 = vset.pattern.permute.xlu0 %v634
        %636 = vperm.xlu0 %635, %v631
        %v637 = vpop.permute.xlu0 %636
        %v638 = vlaneseq
        %v639 = vshrl.u32 %v638, 7
        %v640 = vadd.s32 %v639, 10
        %641 = vset.pattern.permute.xlu0 %v640
        %642 = vperm.xlu0 %641, %v631
        %v643 = vpop.permute.xlu0 %642
        %v644 = vlaneseq
        %v645 = vshrl.u32 %v644, 7
        %v646 = vadd.s32 %v645, 3
        %647 = vset.pattern.permute.xlu0 %v646
        %648 = vperm.xlu0 %647, %v592
        %v649 = vpop.permute.xlu0 %648
        %v650 = vlaneseq
        %v651 = vshrl.u32 %v650, 7
        %v652 = vadd.s32 %v651, 11
        %653 = vset.pattern.permute.xlu0 %v652
        %654 = vperm.xlu0 %653, %v592
        %v655 = vpop.permute.xlu0 %654
        %v656 = vlaneseq
        %v657 = vshrl.u32 %v656, 7
        %v658 = vadd.s32 %v657, 3
        %659 = vset.pattern.permute.xlu0 %v658
        %660 = vperm.xlu0 %659, %v605
        %v661 = vpop.permute.xlu0 %660
        %v662 = vlaneseq
        %v663 = vshrl.u32 %v662, 7
        %v664 = vadd.s32 %v663, 11
        %665 = vset.pattern.permute.xlu0 %v664
        %666 = vperm.xlu0 %665, %v605
        %v667 = vpop.permute.xlu0 %666
        %v668 = vlaneseq
        %v669 = vshrl.u32 %v668, 7
        %v670 = vadd.s32 %v669, 3
        %671 = vset.pattern.permute.xlu0 %v670
        %672 = vperm.xlu0 %671, %v618
        %v673 = vpop.permute.xlu0 %672
        %v674 = vlaneseq
        %v675 = vshrl.u32 %v674, 7
        %v676 = vadd.s32 %v675, 11
        %677 = vset.pattern.permute.xlu0 %v676
        %678 = vperm.xlu0 %677, %v618
        %v679 = vpop.permute.xlu0 %678
        %v680 = vlaneseq
        %v681 = vshrl.u32 %v680, 7
        %v682 = vadd.s32 %v681, 3
        %683 = vset.pattern.permute.xlu0 %v682
        %684 = vperm.xlu0 %683, %v631
        %v685 = vpop.permute.xlu0 %684
        %v686 = vlaneseq
        %v687 = vshrl.u32 %v686, 7
        %v688 = vadd.s32 %v687, 11
        %689 = vset.pattern.permute.xlu0 %v688
        %690 = vperm.xlu0 %689, %v631
        %v691 = vpop.permute.xlu0 %690
        %v692 = vmul.f32 %v440, %v598
        %v693 = vmul.f32 %v441, %v604
        %v694 = vmul.f32 %v442, %v611
        %v695 = vmul.f32 %v443, %v617
        %v696 = vmul.f32 %v444, %v624
        %v697 = vmul.f32 %v445, %v630
        %v698 = vmul.f32 %v446, %v637
        %v699 = vmul.f32 %v447, %v643
        %v700 = vlaneseq
        %v701 = vshrl.u32 %v700, 7
        %v702 = vadd.s32 %v701, 3
        %703 = vset.pattern.permute.xlu0 %v702
        %704 = vperm.xlu0 %703, %v172
        %v705 = vpop.permute.xlu0 %704
        %v706 = vlaneseq
        %v707 = vshrl.u32 %v706, 7
        %v708 = vadd.s32 %v707, 11
        %709 = vset.pattern.permute.xlu0 %v708
        %710 = vperm.xlu0 %709, %v172
        %v711 = vpop.permute.xlu0 %710
        %v712 = vlaneseq
        %v713 = vshrl.u32 %v712, 7
        %v714 = vadd.s32 %v713, 3
        %715 = vset.pattern.permute.xlu0 %v714
        %716 = vperm.xlu0 %715, %v185
        %v717 = vpop.permute.xlu0 %716
        %v718 = vlaneseq
        %v719 = vshrl.u32 %v718, 7
        %v720 = vadd.s32 %v719, 11
        %721 = vset.pattern.permute.xlu0 %v720
        %722 = vperm.xlu0 %721, %v185
        %v723 = vpop.permute.xlu0 %722
        %v724 = vlaneseq
        %v725 = vshrl.u32 %v724, 7
        %v726 = vadd.s32 %v725, 3
        %727 = vset.pattern.permute.xlu0 %v726
        %728 = vperm.xlu0 %727, %v198
        %v729 = vpop.permute.xlu0 %728
        %v730 = vlaneseq
        %v731 = vshrl.u32 %v730, 7
        %v732 = vadd.s32 %v731, 11
        %733 = vset.pattern.permute.xlu0 %v732
        %734 = vperm.xlu0 %733, %v198
        %v735 = vpop.permute.xlu0 %734
        %v736 = vlaneseq
        %v737 = vshrl.u32 %v736, 7
        %v738 = vadd.s32 %v737, 3
        %739 = vset.pattern.permute.xlu0 %v738
        %740 = vperm.xlu0 %739, %v211
        %v741 = vpop.permute.xlu0 %740
        %v742 = vlaneseq
        %v743 = vshrl.u32 %v742, 7
        %v744 = vadd.s32 %v743, 11
        %745 = vset.pattern.permute.xlu0 %v744
        %746 = vperm.xlu0 %745, %v211
        %v747 = vpop.permute.xlu0 %746
        %v748 = vsub.f32 %v705, %v272
        %v749 = vsub.f32 %v711, %v272
        %v750 = vsub.f32 %v717, %v273
        %v751 = vsub.f32 %v723, %v273
        %v752 = vsub.f32 %v729, %v274
        %v753 = vsub.f32 %v735, %v274
        %v754 = vsub.f32 %v741, %v275
        %v755 = vsub.f32 %v747, %v275
        %v756 = vmul.f32 %v748, %v649
        %v757 = vmul.f32 %v749, %v655
        %v758 = vmul.f32 %v750, %v661
        %v759 = vmul.f32 %v751, %v667
        %v760 = vmul.f32 %v752, %v673
        %v761 = vmul.f32 %v753, %v679
        %v762 = vmul.f32 %v754, %v685
        %v763 = vmul.f32 %v755, %v691
        %v764 = vmul.f32 %v692, %v565
        %v765 = vmul.f32 %v693, %v566
        %v766 = vmul.f32 %v694, %v567
        %v767 = vmul.f32 %v695, %v568
        %v768 = vmul.f32 %v696, %v569
        %v769 = vmul.f32 %v697, %v570
        %v770 = vmul.f32 %v698, %v571
        %v771 = vmul.f32 %v699, %v572
        %v780 = vrot.slane %v565, 1
        %v781 = vrot.slane %v566, 1
        %v782 = vsel %vm536, %v780, %v781
        %v783 = vrot.slane %v567, 1
        %v784 = vrot.slane %v568, 1
        %v785 = vsel %vm536, %v783, %v784
        %v786 = vrot.slane %v569, 1
        %v787 = vrot.slane %v570, 1
        %v788 = vsel %vm536, %v786, %v787
        %v789 = vrot.slane %v571, 1
        %v790 = vrot.slane %v572, 1
        %v791 = vsel %vm536, %v789, %v790
        %v800 = vmul.f32 %v756, %v782
        %v801 = vmul.f32 %v757, %v781
        %v802 = vmul.f32 %v758, %v785
        %v803 = vmul.f32 %v759, %v784
        %v804 = vmul.f32 %v760, %v788
        %v805 = vmul.f32 %v761, %v787
        %v806 = vmul.f32 %v762, %v791
        %v807 = vmul.f32 %v763, %v790
        %v808 = vadd.f32 %v764, %v800
        %v809 = vadd.f32 %v765, %v801
        %v810 = vadd.f32 %v766, %v802
        %v811 = vadd.f32 %v767, %v803
        %v812 = vadd.f32 %v768, %v804
        %v813 = vadd.f32 %v769, %v805
        %v814 = vadd.f32 %v770, %v806
        %v815 = vadd.f32 %v771, %v807
        %816 = vrot.lane.b32.xlu0 %v167, 3
        %v817 = vpop.permute.xlu0 %816
        %v819 = vsub.f32 %v167, %v817
        %v820 = vrcp.pop %v819
        %v821 = vmul.f32 %v819, %v820
        %v822 = vsub.f32 1.0, %v821
        %v823 = vmul.f32 %v820, %v822
        %v824 = vadd.f32 %v820, %v823
        %vm825 = vweird.f32 %v819
        %vm826 = vweird.f32 %v820
        %vm827 = vmor %vm825, %vm826
        %v828 = vsel %vm827, %v820, %v824
        %v829 = vand.u32 2147483647, %v819
        %vm830 = vcmp.eq.f32.partialorder %v829, 8.507059e+37
        %v831 = vand.u32 %v819, 2147483648
        %v832 = vor.u32 1.1754944e-38, %v831
        %v833 = vsel %vm830, %v832, %v828
        %v834 = vmul.f32 1.0, %v833
        %v835 = vperm.slane %v834, 0
        %v836 = vlaneseq
        %v837 = vshrl.u32 %v836, 7
        %v838 = vadd.s32 %v837, 3
        %839 = vset.pattern.permute.xlu0 %v838
        %840 = vperm.xlu0 %839, %v835
        %v841 = vpop.permute.xlu0 %840
        %v842 = vperm.slane %v834, 1
        %v843 = vlaneseq
        %v844 = vshrl.u32 %v843, 7
        %v845 = vadd.s32 %v844, 3
        %846 = vset.pattern.permute.xlu0 %v845
        %847 = vperm.xlu0 %846, %v842
        %v848 = vpop.permute.xlu0 %847
        %v849 = vperm.slane %v834, 2
        %v850 = vlaneseq
        %v851 = vshrl.u32 %v850, 7
        %v852 = vadd.s32 %v851, 3
        %853 = vset.pattern.permute.xlu0 %v852
        %854 = vperm.xlu0 %853, %v849
        %v855 = vpop.permute.xlu0 %854
        %v856 = vperm.slane %v834, 3
        %v857 = vlaneseq
        %v858 = vshrl.u32 %v857, 7
        %v859 = vadd.s32 %v858, 3
        %860 = vset.pattern.permute.xlu0 %v859
        %861 = vperm.xlu0 %860, %v856
        %v862 = vpop.permute.xlu0 %861
        %v863 = vlaneseq
        %v864 = vshrl.u32 %v863, 7
        %v865 = vadd.s32 %v864, 4
        %866 = vset.pattern.permute.xlu0 %v865
        %867 = vperm.xlu0 %866, %v835
        %v868 = vpop.permute.xlu0 %867
        %v869 = vlaneseq
        %v870 = vshrl.u32 %v869, 7
        %v871 = vadd.s32 %v870, 4
        %872 = vset.pattern.permute.xlu0 %v871
        %873 = vperm.xlu0 %872, %v842
        %v874 = vpop.permute.xlu0 %873
        %v875 = vlaneseq
        %v876 = vshrl.u32 %v875, 7
        %v877 = vadd.s32 %v876, 4
        %878 = vset.pattern.permute.xlu0 %v877
        %879 = vperm.xlu0 %878, %v849
        %v880 = vpop.permute.xlu0 %879
        %v881 = vlaneseq
        %v882 = vshrl.u32 %v881, 7
        %v883 = vadd.s32 %v882, 4
        %884 = vset.pattern.permute.xlu0 %v883
        %885 = vperm.xlu0 %884, %v856
        %v886 = vpop.permute.xlu0 %885
        %v887 = vmul.f32 %v440, %v841
        %v888 = vmul.f32 %v442, %v848
        %v889 = vmul.f32 %v444, %v855
        %v890 = vmul.f32 %v446, %v862
        %v891 = vlaneseq
        %v892 = vshrl.u32 %v891, 7
        %v893 = vadd.s32 %v892, 4
        %894 = vset.pattern.permute.xlu0 %v893
        %895 = vperm.xlu0 %894, %v172
        %v896 = vpop.permute.xlu0 %895
        %v897 = vlaneseq
        %v898 = vshrl.u32 %v897, 7
        %v899 = vadd.s32 %v898, 4
        %900 = vset.pattern.permute.xlu0 %v899
        %901 = vperm.xlu0 %900, %v185
        %v902 = vpop.permute.xlu0 %901
        %v903 = vlaneseq
        %v904 = vshrl.u32 %v903, 7
        %v905 = vadd.s32 %v904, 4
        %906 = vset.pattern.permute.xlu0 %v905
        %907 = vperm.xlu0 %906, %v198
        %v908 = vpop.permute.xlu0 %907
        %v909 = vlaneseq
        %v910 = vshrl.u32 %v909, 7
        %v911 = vadd.s32 %v910, 4
        %912 = vset.pattern.permute.xlu0 %v911
        %913 = vperm.xlu0 %912, %v211
        %v914 = vpop.permute.xlu0 %913
        %v915 = vsub.f32 %v896, %v272
        %v916 = vsub.f32 %v902, %v273
        %v917 = vsub.f32 %v908, %v274
        %v918 = vsub.f32 %v914, %v275
        %v919 = vmul.f32 %v915, %v868
        %v920 = vmul.f32 %v916, %v874
        %v921 = vmul.f32 %v917, %v880
        %v922 = vmul.f32 %v918, %v886
        %v923 = vmul.f32 %v887, %v808
        %v924 = vmul.f32 %v888, %v810
        %v925 = vmul.f32 %v889, %v812
        %v926 = vmul.f32 %v890, %v814
        %v935 = vrot.slane %v808, 1
        %v936 = vrot.slane %v809, 1
        %v937 = vsel %vm536, %v935, %v936
        %v938 = vrot.slane %v810, 1
        %v939 = vrot.slane %v811, 1
        %v940 = vsel %vm536, %v938, %v939
        %v941 = vrot.slane %v812, 1
        %v942 = vrot.slane %v813, 1
        %v943 = vsel %vm536, %v941, %v942
        %v944 = vrot.slane %v814, 1
        %v945 = vrot.slane %v815, 1
        %v946 = vsel %vm536, %v944, %v945
        %v951 = vmul.f32 %v919, %v937
        %v952 = vmul.f32 %v920, %v940
        %v953 = vmul.f32 %v921, %v943
        %v954 = vmul.f32 %v922, %v946
        %v955 = vadd.f32 %v923, %v951
        %v956 = vadd.f32 %v924, %v952
        %v957 = vadd.f32 %v925, %v953
        %v958 = vadd.f32 %v926, %v954
        %v959 = vxor.u32 %v166, 2147483648
        %v960 = vmul.f32 %v959, 1.442695
        %v961 = vpow.pop %v960
        %v962 = vadd.f32 %v961, 1.0
        %v963 = vrcp.pop %v962
        %v964 = vmul.f32 %v962, %v963
        %v965 = vsub.f32 1.0, %v964
        %v966 = vmul.f32 %v963, %v965
        %v967 = vadd.f32 %v963, %v966
        %vm968 = vweird.f32 %v962
        %vm969 = vweird.f32 %v963
        %vm970 = vmor %vm968, %vm969
        %v971 = vsel %vm970, %v963, %v967
        %v972 = vand.u32 2147483647, %v962
        %vm973 = vcmp.eq.f32.partialorder %v972, 8.507059e+37
        %v974 = vand.u32 %v962, 2147483648
        %v975 = vor.u32 1.1754944e-38, %v974
        %v976 = vsel %vm973, %v975, %v971
        %v977 = vmul.f32 1.0, %v976
        %v978 = vmul.f32 %v166, %v977
        %v979 = vld [vmem:[%s2] sm:$0xff]
        %vm980 = vcmask 293888
        %v982 = vsel %vm980, %v979, 0
        %vm984 = vcmask 1043456
        %v986 = vsel %vm984, %v978, 0
        %988 = vmatpush.msra.mxu0 0.0
        %989 = vmatpush.msra.mxu0 0.0
        %990 = vmatpush.msra.mxu0 0.0
        %991 = vmatpush.msra.mxu0 0.0
        %992 = vmatpush.msra.mxu0 0.0
        %993 = vmatpush.msra.mxu0 0.0
        %994 = vmatpush.msra.mxu0 0.0
        %995 = vmatpush.msra.mxu0 0.0
        %996 = vmatpush.msra.mxu0 0.0
        %997 = vmatpush.msra.mxu0 0.0
        %998 = vmatpush.msra.mxu0 0.0
        %v999 = vand.u32 %v986, 4294901760
        %1000 = vmatpush.msra.mxu0 %v999
        %v1001 = vand.u32 %v958, 4294901760
        %1002 = vmatpush.msra.mxu0 %v1001
        %v1003 = vand.u32 %v957, 4294901760
        %1004 = vmatpush.msra.mxu0 %v1003
        %v1005 = vand.u32 %v956, 4294901760
        %1006 = vmatpush.msra.mxu0 %v1005
        %v1007 = vand.u32 %v955, 4294901760
        %1008 = vmatpush.msra.mxu0 %v1007
        %v1009 = vand.u32 %v982, 4294901760
        %v1010 = vsub.f32 %v982, %v1009
        %v1011 = vand.u32 %v1010, 4294901760
        %v1012 = vsub.f32 %v1010, %v1011
        %v1013 = vand.u32 %v1012, 4294901760
        %1014 = vmatmul.f32.gmra.mxu0 %v1013
        %v1015 = vpop.f32.mrf.mxu0
        %v1016 = vadd.f32 0.0, %v1015
        %1017 = vdwg.mxu0
        %1018 = vmatpush.msra.mxu0 0.0
        %1019 = vmatpush.msra.mxu0 0.0
        %1020 = vmatpush.msra.mxu0 0.0
        %1021 = vmatpush.msra.mxu0 0.0
        %1022 = vmatpush.msra.mxu0 0.0
        %1023 = vmatpush.msra.mxu0 0.0
        %1024 = vmatpush.msra.mxu0 0.0
        %1025 = vmatpush.msra.mxu0 0.0
        %1026 = vmatpush.msra.mxu0 0.0
        %1027 = vmatpush.msra.mxu0 0.0
        %1028 = vmatpush.msra.mxu0 0.0
        %v1029 = vand.u32 %v986, 4294901760
        %v1030 = vsub.f32 %v986, %v1029
        %v1031 = vand.u32 %v1030, 4294901760
        %v1032 = vsub.f32 %v1030, %v1031
        %v1033 = vand.u32 %v1032, 4294901760
        %1034 = vmatpush.msra.mxu0 %v1033
        %v1035 = vand.u32 %v958, 4294901760
        %v1036 = vsub.f32 %v958, %v1035
        %v1037 = vand.u32 %v1036, 4294901760
        %v1038 = vsub.f32 %v1036, %v1037
        %v1039 = vand.u32 %v1038, 4294901760
        %1040 = vmatpush.msra.mxu0 %v1039
        %v1041 = vand.u32 %v957, 4294901760
        %v1042 = vsub.f32 %v957, %v1041
        %v1043 = vand.u32 %v1042, 4294901760
        %v1044 = vsub.f32 %v1042, %v1043
        %v1045 = vand.u32 %v1044, 4294901760
        %1046 = vmatpush.msra.mxu0 %v1045
        %v1047 = vand.u32 %v956, 4294901760
        %v1048 = vsub.f32 %v956, %v1047
        %v1049 = vand.u32 %v1048, 4294901760
        %v1050 = vsub.f32 %v1048, %v1049
        %v1051 = vand.u32 %v1050, 4294901760
        %1052 = vmatpush.msra.mxu0 %v1051
        %v1053 = vand.u32 %v955, 4294901760
        %v1054 = vsub.f32 %v955, %v1053
        %v1055 = vand.u32 %v1054, 4294901760
        %v1056 = vsub.f32 %v1054, %v1055
        %v1057 = vand.u32 %v1056, 4294901760
        %1058 = vmatpush.msra.mxu0 %v1057
        %v1059 = vand.u32 %v982, 4294901760
        %1060 = vmatmul.f32.gmra.mxu0 %v1059
        %v1061 = vpop.f32.mrf.mxu0
        %v1062 = vadd.f32 %v1016, %v1061
        %1063 = vdwg.mxu0
        %1064 = vmatpush.msra.mxu0 0.0
        %1065 = vmatpush.msra.mxu0 0.0
        %1066 = vmatpush.msra.mxu0 0.0
        %1067 = vmatpush.msra.mxu0 0.0
        %1068 = vmatpush.msra.mxu0 0.0
        %1069 = vmatpush.msra.mxu0 0.0
        %1070 = vmatpush.msra.mxu0 0.0
        %1071 = vmatpush.msra.mxu0 0.0
        %1072 = vmatpush.msra.mxu0 0.0
        %1073 = vmatpush.msra.mxu0 0.0
        %1074 = vmatpush.msra.mxu0 0.0
        %v1075 = vand.u32 %v986, 4294901760
        %v1076 = vsub.f32 %v986, %v1075
        %1077 = vmatpush.msra.mxu0 %v1076
        %v1078 = vand.u32 %v958, 4294901760
        %v1079 = vsub.f32 %v958, %v1078
        %1080 = vmatpush.msra.mxu0 %v1079
        %v1081 = vand.u32 %v957, 4294901760
        %v1082 = vsub.f32 %v957, %v1081
        %1083 = vmatpush.msra.mxu0 %v1082
        %v1084 = vand.u32 %v956, 4294901760
        %v1085 = vsub.f32 %v956, %v1084
        %1086 = vmatpush.msra.mxu0 %v1085
        %v1087 = vand.u32 %v955, 4294901760
        %v1088 = vsub.f32 %v955, %v1087
        %1089 = vmatpush.msra.mxu0 %v1088
        %v1090 = vand.u32 %v982, 4294901760
        %v1091 = vsub.f32 %v982, %v1090
        %1092 = vmatmul.f32.gmra.mxu0 %v1091
        %v1093 = vpop.f32.mrf.mxu0
        %v1094 = vadd.f32 %v1062, %v1093
        %1095 = vdwg.mxu0
        %1096 = vmatpush.msra.mxu0 0.0
        %1097 = vmatpush.msra.mxu0 0.0
        %1098 = vmatpush.msra.mxu0 0.0
        %1099 = vmatpush.msra.mxu0 0.0
        %1100 = vmatpush.msra.mxu0 0.0
        %1101 = vmatpush.msra.mxu0 0.0
        %1102 = vmatpush.msra.mxu0 0.0
        %1103 = vmatpush.msra.mxu0 0.0
        %1104 = vmatpush.msra.mxu0 0.0
        %1105 = vmatpush.msra.mxu0 0.0
        %1106 = vmatpush.msra.mxu0 0.0
        %v1107 = vand.u32 %v986, 4294901760
        %1108 = vmatpush.msra.mxu0 %v1107
        %v1109 = vand.u32 %v958, 4294901760
        %1110 = vmatpush.msra.mxu0 %v1109
        %v1111 = vand.u32 %v957, 4294901760
        %1112 = vmatpush.msra.mxu0 %v1111
        %v1113 = vand.u32 %v956, 4294901760
        %1114 = vmatpush.msra.mxu0 %v1113
        %v1115 = vand.u32 %v955, 4294901760
        %1116 = vmatpush.msra.mxu0 %v1115
        %v1117 = vand.u32 %v982, 4294901760
        %v1118 = vsub.f32 %v982, %v1117
        %v1119 = vand.u32 %v1118, 4294901760
        %1120 = vmatmul.f32.gmra.mxu0 %v1119
        %v1121 = vpop.f32.mrf.mxu0
        %v1122 = vadd.f32 %v1094, %v1121
        %1123 = vdwg.mxu0
        %1124 = vmatpush.msra.mxu0 0.0
        %1125 = vmatpush.msra.mxu0 0.0
        %1126 = vmatpush.msra.mxu0 0.0
        %1127 = vmatpush.msra.mxu0 0.0
        %1128 = vmatpush.msra.mxu0 0.0
        %1129 = vmatpush.msra.mxu0 0.0
        %1130 = vmatpush.msra.mxu0 0.0
        %1131 = vmatpush.msra.mxu0 0.0
        %1132 = vmatpush.msra.mxu0 0.0
        %1133 = vmatpush.msra.mxu0 0.0
        %1134 = vmatpush.msra.mxu0 0.0
        %v1135 = vand.u32 %v986, 4294901760
        %v1136 = vsub.f32 %v986, %v1135
        %v1137 = vand.u32 %v1136, 4294901760
        %1138 = vmatpush.msra.mxu0 %v1137
        %v1139 = vand.u32 %v958, 4294901760
        %v1140 = vsub.f32 %v958, %v1139
        %v1141 = vand.u32 %v1140, 4294901760
        %1142 = vmatpush.msra.mxu0 %v1141
        %v1143 = vand.u32 %v957, 4294901760
        %v1144 = vsub.f32 %v957, %v1143
        %v1145 = vand.u32 %v1144, 4294901760
        %1146 = vmatpush.msra.mxu0 %v1145
        %v1147 = vand.u32 %v956, 4294901760
        %v1148 = vsub.f32 %v956, %v1147
        %v1149 = vand.u32 %v1148, 4294901760
        %1150 = vmatpush.msra.mxu0 %v1149
        %v1151 = vand.u32 %v955, 4294901760
        %v1152 = vsub.f32 %v955, %v1151
        %v1153 = vand.u32 %v1152, 4294901760
        %1154 = vmatpush.msra.mxu0 %v1153
        %v1155 = vand.u32 %v982, 4294901760
        %1156 = vmatmul.f32.gmra.mxu0 %v1155
        %v1157 = vpop.f32.mrf.mxu0
        %v1158 = vadd.f32 %v1122, %v1157
        %1159 = vdwg.mxu0
        %1160 = vmatpush.msra.mxu0 0.0
        %1161 = vmatpush.msra.mxu0 0.0
        %1162 = vmatpush.msra.mxu0 0.0
        %1163 = vmatpush.msra.mxu0 0.0
        %1164 = vmatpush.msra.mxu0 0.0
        %1165 = vmatpush.msra.mxu0 0.0
        %1166 = vmatpush.msra.mxu0 0.0
        %1167 = vmatpush.msra.mxu0 0.0
        %1168 = vmatpush.msra.mxu0 0.0
        %1169 = vmatpush.msra.mxu0 0.0
        %1170 = vmatpush.msra.mxu0 0.0
        %v1171 = vand.u32 %v986, 4294901760
        %1172 = vmatpush.msra.mxu0 %v1171
        %v1173 = vand.u32 %v958, 4294901760
        %1174 = vmatpush.msra.mxu0 %v1173
        %v1175 = vand.u32 %v957, 4294901760
        %1176 = vmatpush.msra.mxu0 %v1175
        %v1177 = vand.u32 %v956, 4294901760
        %1178 = vmatpush.msra.mxu0 %v1177
        %v1179 = vand.u32 %v955, 4294901760
        %1180 = vmatpush.msra.mxu0 %v1179
        %v1181 = vand.u32 %v982, 4294901760
        %1182 = vmatmul.f32.gmra.mxu0 %v1181
        %v1183 = vpop.f32.mrf.mxu0
        %v1184 = vadd.f32 %v1158, %v1183
        %1185 = vdwg.mxu0
        %1186 = vst [vmem:[%s161] sm:$0xff] %v1184
        %s1187 = sand.u32 %s93, 1
        %s1188 = scalar_lea.sflag [#allocation3], %s1187
        %s1189 = sand.u32 %s93, 1
        %s1190 = smul.addr %s1189, 8
        %s1191 = scalar_lea.vmem [#allocation2], %s1190
        // Predicated region
        $region33: #{kan_layer_forward.1} parent=31 // pred_check
          %p1192 = pneg %p103
        $region34: #{kan_layer_forward.1} parent=31 // pred_check_branch
          %1194 = sbr.rel (%p1192) target = $region36
        $region35: #{kan_layer_forward.1} parent=31 // pred_region
          %1196 = vsyncadd %s1188, 0
          %s1197 = smul.addr %s17, 8
          %s1198 = scalar_lea.hbm %s3, %s1197
          %s1200 = sshll.u32 %s1191, 4
          %s1201 = int_to_ptr.vmem [resolvable:$true] %s1200
          %s1202 = sshll.u32 %s1198, 4
          %s1203 = int_to_ptr.hbm [resolvable:$true] %s1202
          %1205 = dma.vmem_to_hbm [thread:$0]  %s1201, 128, %s1203, %s1188
        $region36: #{kan_layer_forward.1} parent=31 // pred_fallthru
          _
      $region32: #{kan_layer_forward.1} parent=5 // pred_fallthru
        _
      %p1206 = scmp.le.s32.totalorder 2, %s12
      // Predicated region
      $region37: #{kan_layer_forward.1} parent=5 // pred_check
        %p1207 = pneg %p1206
      $region38: #{kan_layer_forward.1} parent=5 // pred_check_branch
        %1209 = sbr.rel (%p1207) target = $region40
      $region39: #{kan_layer_forward.1} parent=5 // pred_region
        %s1210 = ssub.s32 %s12, 2
        // Predicated region
        $region41: #{kan_layer_forward.1} parent=39 // pred_check
          %p1211 = pneg %p109
        $region42: #{kan_layer_forward.1} parent=39 // pred_check_branch
          %1213 = sbr.rel (%p1211) target = $region44
        $region43: #{kan_layer_forward.1} parent=39 // pred_region
          %s1214 = sand.u32 %s94, 1
          %s1215 = scalar_lea.sflag [#allocation3], %s1214
          %s1216 = sand.u32 %s94, 1
          %s1217 = smul.addr %s1216, 8
          %s1218 = scalar_lea.vmem [#allocation2], %s1217
          %1220 = dma.done %s1215, 128
        $region44: #{kan_layer_forward.1} parent=39 // pred_fallthru
          _
      $region40: #{kan_layer_forward.1} parent=5 // pred_fallthru
        _
    $region6: #{kan_layer_forward.1} parent=1 // loop_footer
      %s16 = sadd.s32 1, %s12
    $region7: #{kan_layer_forward.1} parent=1 // loop_footer_branch
      %11 = sbr.rel target = $region3
    $region8: #{kan_layer_forward.1} parent=1 // loop_exit
      _
    %1221 = vsyncpa [#allocation3], 1
    %s1222 = scalar_lea.sflag [#allocation3], 1
    %1223 = vsyncpa %s1222, 1

</llo_original>
